<compile_context>
chip_gen: v7x
topology: tpu7x:2x2x1
jax: 0.10.0
libtpu: 0.0.40
codegen_flags: <defaults>
</compile_context>

<pallas_src>
import functools

import jax
import jax.numpy as jnp
from jax import lax
from jax.experimental import pallas as pl
from jax.experimental.pallas import tpu as pltpu


# --------------------------------------------------------------------------
# pltpu.roll shift-convention guard (one-time, host side)
# --------------------------------------------------------------------------
_ROLL_JNP_SEMANTICS = True   # expected: pltpu.roll(x, s) == jnp.roll(x, s)


def _probe_roll_direction():
    """Cheap one-time check that pltpu.roll follows jnp.roll's shift
    convention; if not, _roll() flips the sign so the kernel stays correct."""
    global _ROLL_JNP_SEMANTICS

    def k(x_ref, o_ref):
        o_ref[...] = pltpu.roll(x_ref[...], 1, axis=1)

    x = jnp.broadcast_to(jnp.arange(128, dtype=jnp.float32), (8, 128))
    y = pl.pallas_call(k, out_shape=jax.ShapeDtypeStruct((8, 128), jnp.float32))(x)
    _ROLL_JNP_SEMANTICS = bool(jnp.allclose(y, jnp.roll(x, 1, axis=1)))


def _roll(x, s):
    """jnp.roll(x, s, axis=-1): out[..., p] = x[..., (p - s) % n], via XLU."""
    n = x.shape[-1]
    if not _ROLL_JNP_SEMANTICS:
        s = -s
    s = s % n
    if s == 0:
        return x
    return pltpu.roll(x, s, axis=x.ndim - 1)


# --------------------------------------------------------------------------
# in-kernel helpers
# --------------------------------------------------------------------------
def _mish(y):
    # y * tanh(softplus(y)) with a single exp:
    #   tanh(log1p(e^y)) = ((1+e^y)^2 - 1) / ((1+e^y)^2 + 1)
    e = jnp.exp(jnp.minimum(y, 20.0))
    t2 = (1.0 + e) * (1.0 + e)
    return jnp.where(y > 20.0, y, y * (t2 - 1.0) / (t2 + 1.0))


def _make_masks(H, W, C, N):
    """Reflect-boundary masks, materialized once at full (C, N) width.
    row uses %H so boundaries stay per-sample when batch is folded on lanes."""
    lane = lax.broadcasted_iota(jnp.int32, (1, N), 1)
    col = lane % W
    row = (lane // W) % H
    return tuple(jnp.broadcast_to(m, (C, N))
                 for m in (col == 0, col == W - 1, row == 0, row == H - 1))


def _im2col_reflect(x, W, masks):
    """ReflectionPad2d(1) + 3x3 im2col, entirely in-register.

    x     : (C, N) channel-on-sublane, spatial row-major on lanes
            (N = S*H*W; samples contiguous, H*W lanes each)
    masks : (col==0, col==W-1, row==0, row==H-1), each (C, N) bool
    returns (9*C, N) patch matrix, tap-major (tap = 3*dy + dx)
    """
    m_c0, m_cW, m_r0, m_rH = masks
    xm = _roll(x, 1)      # p <- p-1 (pixel to the left)
    xp = _roll(x, -1)     # p <- p+1 (pixel to the right)
    # dx = 0,1,2 <-> column offsets -1,0,+1 with reflection at the edges.
    # (wrapped lanes of the rolls are never selected, so no garbage leaks in)
    cvs = [jnp.where(m_c0, xp, xm), x, jnp.where(m_cW, xm, xp)]

    slabs = [None] * 9
    for dx in range(3):
        cv = cvs[dx]
        up = _roll(cv, W)      # p <- p-W (row above)
        dn = _roll(cv, -W)     # p <- p+W (row below)
        slabs[0 * 3 + dx] = jnp.where(m_r0, dn, up)    # dy = 0 (-1)
        slabs[1 * 3 + dx] = cv                         # dy = 1 ( 0)
        slabs[2 * 3 + dx] = jnp.where(m_rH, up, dn)    # dy = 2 (+1)
    return jnp.concatenate(slabs, axis=0)


def _gn_mish(y, gamma, beta, n, S):
    """GroupNorm (group size 1) + Mish.  Stats are per (sample, channel) over
    the spatial lanes; per-sample slices are vreg-aligned (n % 128 == 0)."""
    inv_n = 1.0 / n
    outs = []
    for s in range(S):
        ys = y[:, s * n:(s + 1) * n]
        mean = jnp.sum(ys, axis=1, keepdims=True) * inv_n
        c = ys - mean
        var = jnp.sum(c * c, axis=1, keepdims=True) * inv_n
        outs.append(c * (lax.rsqrt(var + 1e-5) * gamma) + beta)
    z = outs[0] if S == 1 else jnp.concatenate(outs, axis=1)
    return _mish(z)


# --------------------------------------------------------------------------
# fused kernel (grid = (#TensorCores,); everything stays in VMEM)
# --------------------------------------------------------------------------
def _resnet_kernel(x_ref, w1r_ref, w2_ref, vec_ref, out_ref, *, H, W, S, Cout):
    n = H * W
    x = x_ref[0]                                    # (Cpad, S*n)

    g1, bt1 = vec_ref[:, 0:1], vec_ref[:, 1:2]
    g2, bt2 = vec_ref[:, 2:3], vec_ref[:, 3:4]
    rb = vec_ref[:, 4:5]

    masks = _make_masks(H, W, x.shape[0], x.shape[1])   # built once, used twice

    # block1 conv3x3 (reflect pad) + residual 1x1 conv: ONE MXU matmul.
    p1 = _im2col_reflect(x, W, masks)               # (9*Cpad, S*n)
    hr = jnp.dot(w1r_ref[...], p1, preferred_element_type=jnp.float32)  # (2*Cout, S*n)
    h = _gn_mish(hr[:Cout, :], g1, bt1, n, S)       # conv bias cancelled by GN mean-sub

    # block2 conv3x3 (reflect pad) + GN + Mish
    p2 = _im2col_reflect(h, W, masks)
    h = jnp.dot(w2_ref[...], p2, preferred_element_type=jnp.float32)
    h = _gn_mish(h, g2, bt2, n, S)

    out_ref[0] = (h + hr[Cout:, :] + rb).astype(out_ref.dtype)   # lane-dense store


# --------------------------------------------------------------------------
# wrapper
# --------------------------------------------------------------------------
def _tensorcores_per_chip():
    # v7x exposes 2 TensorCores behind one device; earlier gens are 1 TC per
    # visible device.  Heuristic on the device-kind string, safe fallback 1.
    try:
        kind = jax.devices()[0].device_kind.lower()
    except Exception:
        return 1
    return 2 if "7" in kind else 1


@functools.partial(jax.jit, static_argnames=("groups",))
def resnet_block_cond(x_nchw, params, groups):
    """ResnetBlockCond forward, NCHW in / NCHW out."""
    B, Cin, H, W = x_nchw.shape
    Cout = params["conv1_w"].shape[0]
    n = H * W
    assert groups == Cout, "kernel implements the group-size-1 config (groups == dim_out)"
    assert n % 128 == 0, "lane-dense layout assumes H*W is a multiple of 128"
    Cpad = max(8, -(-Cin // 8) * 8)
    assert Cpad == Cout, "shared boundary masks assume padded-in channels == out channels"

    # Fold samples onto the lane axis; keep exactly one grid step per TensorCore.
    cores = _tensorcores_per_chip()
    S = max(1, -(-B // cores))        # samples per grid step (contiguous on lanes)
    G = -(-B // S)                    # grid steps
    Bpad = G * S

    # ---- host-side packing (pure layout; negligible) ----
    xf = x_nchw.reshape(B, Cin, n)
    xf = jnp.pad(xf, ((0, Bpad - B), (0, Cpad - Cin), (0, 0)))
    xf = xf.reshape(G, S, Cpad, n).transpose(0, 2, 1, 3).reshape(G, Cpad, S * n)

    def pack_w(w, cpad):
        co, ci = w.shape[0], w.shape[1]
        wt = jnp.transpose(w, (0, 2, 3, 1))                  # (Co, 3, 3, Ci)
        wt = jnp.pad(wt, ((0, 0), (0, 0), (0, 0), (0, cpad - ci)))
        return wt.reshape(co, 9 * cpad)                      # col = tap*cpad + c

    w1m = pack_w(params["conv1_w"], Cpad)                    # (Cout, 9*Cpad)
    # Residual 1x1 conv as centre-tap (tap 4) columns, stacked under conv1:
    # block1 conv + residual share one matmul against the same patch matrix.
    rw = params["res_w"].reshape(Cout, Cin)
    rw_big = jnp.zeros((Cout, 9 * Cpad), jnp.float32)
    rw_big = rw_big.at[:, 4 * Cpad:4 * Cpad + Cin].set(rw)
    w1r = jnp.concatenate([w1m, rw_big], axis=0)             # (2*Cout, 9*Cpad)

    w2m = pack_w(params["conv2_w"], Cout)                    # (Cout, 9*Cout)
    zeros = jnp.zeros((Cout,), jnp.float32)
    vecs = jnp.stack([params["gn1_g"], params["gn1_b"],
                      params["gn2_g"], params["gn2_b"],
                      params["res_b"], zeros, zeros, zeros], axis=1)   # (Cout, 8)

    out = pl.pallas_call(
        functools.partial(_resnet_kernel, H=H, W=W, S=S, Cout=Cout),
        out_shape=jax.ShapeDtypeStruct((G, Cout, S * n), jnp.float32),
        grid=(G,),
        in_specs=[
            pl.BlockSpec((1, Cpad, S * n), lambda g: (g, 0, 0)),
            pl.BlockSpec(w1r.shape, lambda g: (0, 0)),
            pl.BlockSpec(w2m.shape, lambda g: (0, 0)),
            pl.BlockSpec(vecs.shape, lambda g: (0, 0)),
        ],
        out_specs=pl.BlockSpec((1, Cout, S * n), lambda g: (g, 0, 0)),
        compiler_params=pltpu.CompilerParams(
            dimension_semantics=("parallel",)),   # shards the grid across v7x's 2 TCs
    )(xf, w1r, w2m, vecs)

    out = out.reshape(G, Cout, S, n).transpose(0, 2, 1, 3)
    return out.reshape(Bpad, Cout, H, W)[:B]      # trivial un-fold back to NCHW


# --------------------------------------------------------------------------
# plain-JAX reference (for self-check)
# --------------------------------------------------------------------------
def _ref_block(x, w, b, gamma, beta, groups):
    xpad = jnp.pad(x, ((0, 0), (0, 0), (1, 1), (1, 1)), mode="reflect")
    y = lax.conv_general_dilated(xpad, w, (1, 1), "VALID",
                                 dimension_numbers=("NCHW", "OIHW", "NCHW"))
    y = y + b.reshape(1, -1, 1, 1)
    B, C, H, W = y.shape
    yg = y.reshape(B, groups, C // groups, H, W)
    mean = yg.mean(axis=(2, 3, 4), keepdims=True)
    var = yg.var(axis=(2, 3, 4), keepdims=True)
    yn = ((yg - mean) * lax.rsqrt(var + 1e-5)).reshape(B, C, H, W)
    yn = yn * gamma.reshape(1, -1, 1, 1) + beta.reshape(1, -1, 1, 1)
    return yn * jnp.tanh(jax.nn.softplus(yn))


def _ref_forward(x, params, groups):
    h = _ref_block(x, params["conv1_w"], params["conv1_b"],
                   params["gn1_g"], params["gn1_b"], groups)
    h = _ref_block(h, params["conv2_w"], params["conv2_b"],
                   params["gn2_g"], params["gn2_b"], groups)
    res = lax.conv_general_dilated(x, params["res_w"], (1, 1), "VALID",
                                   dimension_numbers=("NCHW", "OIHW", "NCHW"))
    return h + res + params["res_b"].reshape(1, -1, 1, 1)


# --------------------------------------------------------------------------
# main
# --------------------------------------------------------------------------
if __name__ == "__main__":
    B, Cin, Cout, H, W, groups = 2, 4, 8, 16, 16, 8

    key = jax.random.PRNGKey(0)
    ks = jax.random.split(key, 11)
    params = {
        "conv1_w": 0.2 * jax.random.normal(ks[0], (Cout, Cin, 3, 3), jnp.float32),
        "conv1_b": 0.1 * jax.random.normal(ks[1], (Cout,), jnp.float32),
        "gn1_g": 1.0 + 0.1 * jax.random.normal(ks[2], (Cout,), jnp.float32),
        "gn1_b": 0.1 * jax.random.normal(ks[3], (Cout,), jnp.float32),
        "conv2_w": 0.2 * jax.random.normal(ks[4], (Cout, Cout, 3, 3), jnp.float32),
        "conv2_b": 0.1 * jax.random.normal(ks[5], (Cout,), jnp.float32),
        "gn2_g": 1.0 + 0.1 * jax.random.normal(ks[6], (Cout,), jnp.float32),
        "gn2_b": 0.1 * jax.random.normal(ks[7], (Cout,), jnp.float32),
        "res_w": 0.2 * jax.random.normal(ks[8], (Cout, Cin, 1, 1), jnp.float32),
        "res_b": 0.1 * jax.random.normal(ks[9], (Cout,), jnp.float32),
    }
    # PyTorch-layout input: NCHW
    x = jax.random.normal(ks[10], (B, Cin, H, W), jnp.float32)

    _probe_roll_direction()   # one-time pltpu.roll shift-convention guard

    out = jax.block_until_ready(resnet_block_cond(x, params, groups))
    ref = _ref_forward(x, params, groups)

    assert out.shape == (B, Cout, H, W)
    max_err = float(jnp.max(jnp.abs(out - ref)))
    assert jnp.allclose(out, ref, atol=1e-3, rtol=1e-3), max_err
    print("KERNEL_OK")
</pallas_src>

<mosaic_0001>
module attributes {stable_mosaic.version = 11 : i64} {
  func.func @k(%arg0: memref<8x128xf32, #tpu.memory_space<vmem>>, %arg1: memref<8x128xf32, #tpu.memory_space<vmem>>) attributes {dimension_semantics = [], scalar_prefetch = 0 : i64, scratch_operands = 0 : i64, tpu.core_type = #tpu.core_type<tc>} {
    %c0 = arith.constant 0 : index
    %c0_0 = arith.constant 0 : index
    %0 = vector.load %arg0[%c0, %c0_0] : memref<8x128xf32, #tpu.memory_space<vmem>>, vector<8x128xf32>
    %c1_i32 = arith.constant 1 : i32
    %1 = tpu.dynamic_rotate %0 by %c1_i32 dim 1 : vector<8x128xf32>, i32 -> vector<8x128xf32>
    %c0_1 = arith.constant 0 : index
    %c0_2 = arith.constant 0 : index
    %2 = vector.load %arg1[%c0_1, %c0_2] : memref<8x128xf32, #tpu.memory_space<vmem>>, vector<8x128xf32>
    tpu.vector_store %arg1[%c0_1, %c0_2], %1 {strides = array<i32>} : memref<8x128xf32, #tpu.memory_space<vmem>>, vector<8x128xf32>,
    return
  }
}

</mosaic_0001>

<llo_original>
// kernel: tpu_custom_call.1
$region0: #{tpu_custom_call.1}
  #allocation0 [shape = 'u32[]', space=smem, size = 0x4, offset = 0x4, fixed_abs, tag = 'smem constant byte address 0x4 - core index']
  #allocation1 [shape = 'u32[144,128]{1,0:T(1,128)}', space=vmem, size = 0x12000, scoped, tag = 'internal scratch']
  %s0 = inlined_call_operand.hbm [shape: f32[8,128], index: 0, kind: input, shape index: {}]
  %s1 = inlined_call_operand.hbm [shape: f32[8,128], index: 1, kind: output, shape index: {}]
  %s2 = sld [smem:[#allocation0]]
  $region18: #{tpu_custom_call.1} parent=0
    _
  %s4 = ssub.s32 1, %s2
  %s5 = scalar_select 0, %s4, %s2
  $region1: #{tpu_custom_call.1} parent=0
    #allocation2 [shape = 'u8[4096]{0}', space=vmem, size = 0x1000, scoped, tag = 'input window, operand 0, single buffered']
    #allocation3 [shape = 's32[1]{0}', space=sflag, size = 0x4, scoped, tag = 'scoped memory for tpu_custom_call.1']
    #allocation4 [shape = 's32[1]{0}', space=sflag, size = 0x4, scoped, tag = 'scoped memory for tpu_custom_call.1']
    #allocation5 [shape = 'u8[4096]{0}', space=vmem, size = 0x1000, scoped, tag = 'output window, operand 0, single buffered']
    %6 = vsyncpa [#allocation3], 0
    %7 = vsyncpa [#allocation4], 0
    // Predicated region
    $region2: #{tpu_custom_call.1} parent=1 // pred_check
      _
    $region3: #{tpu_custom_call.1} parent=1 // pred_check_branch
      %9 = sbr.rel (0) target = $region5
    $region4: #{tpu_custom_call.1} parent=1 // pred_region
      %s11 = ssub.s32 128, 128
      %12 = vsyncadd [#allocation3], %s11
      %s14 = sshll.u32 [#allocation2], 4
      %s15 = int_to_ptr.vmem [resolvable:$true] %s14
      %17 = dma.hbm_to_vmem [thread:$0]  %s0, 128, %s15, [#allocation3]
    $region5: #{tpu_custom_call.1} parent=1 // pred_fallthru
      _
    // Predicated region
    $region6: #{tpu_custom_call.1} parent=1 // pred_check
      _
    $region7: #{tpu_custom_call.1} parent=1 // pred_check_branch
      %19 = sbr.rel (0) target = $region9
    $region8: #{tpu_custom_call.1} parent=1 // pred_region
      %20 = dma.done [#allocation3], 128
    $region9: #{tpu_custom_call.1} parent=1 // pred_fallthru
      _
    %v21 = vld [vmem:[#allocation2] sm:$0xff]
    %22 = vrot.lane.b32.xlu0 %v21, 1
    %v23 = vpop.permute.xlu0 %22
    %24 = vst [vmem:[#allocation5] sm:$0xff] %v23
    // Predicated region
    $region10: #{tpu_custom_call.1} parent=1 // pred_check
      _
    $region11: #{tpu_custom_call.1} parent=1 // pred_check_branch
      %26 = sbr.rel (0) target = $region13
    $region12: #{tpu_custom_call.1} parent=1 // pred_region
      %s28 = ssub.s32 128, 128
      %29 = vsyncadd [#allocation4], %s28
      %s31 = sshll.u32 [#allocation5], 4
      %s32 = int_to_ptr.vmem [resolvable:$true] %s31
      %34 = dma.vmem_to_hbm [thread:$0]  %s32, 128, %s1, [#allocation4]
    $region13: #{tpu_custom_call.1} parent=1 // pred_fallthru
      _
    // Predicated region
    $region14: #{tpu_custom_call.1} parent=1 // pred_check
      _
    $region15: #{tpu_custom_call.1} parent=1 // pred_check_branch
      %36 = sbr.rel (0) target = $region17
    $region16: #{tpu_custom_call.1} parent=1 // pred_region
      %37 = dma.done [#allocation4], 128
    $region17: #{tpu_custom_call.1} parent=1 // pred_fallthru
      _
    %38 = vsyncpa [#allocation3], 1
    %39 = vsyncpa [#allocation4], 1

</llo_original>
